<compile_context>
chip_gen: v7x
topology: tpu7x:2x2x1
jax: 0.10.0
libtpu: 0.0.40
codegen_flags: <defaults>
</compile_context>

<pallas_src>
import jax
import jax.numpy as jnp
from jax.experimental import pallas as pl
from jax.experimental.pallas import tpu as pltpu


def _decoder_kernel(fref_ref, f_ref, wd1_ref, aux_ref, bd2_ref, out_ref):
    # fref_ref, f_ref : [TB, F]   f32   activation tiles
    # wd1_ref         : [2F, DH]  bf16  whole weight, VMEM-resident across grid
    # aux_ref         : [2, DH]   f32   row 0 = bd1, row 1 = wd2 row
    # bd2_ref         : [1, 1]    f32   SMEM scalar
    # out_ref         : [1, TB]   f32   lane-dense (batch on lanes)
    tb = fref_ref.shape[0]

    # cat_module: concat along the feature (lane) axis; cast to bf16 in-kernel
    # for the MXU (f32 accumulation via preferred_element_type).
    cat = jnp.concatenate([fref_ref[...], f_ref[...]], axis=-1).astype(jnp.bfloat16)

    # decoder_module, first Linear: single MXU push against the full wd1.
    h = jnp.dot(cat, wd1_ref[...], preferred_element_type=jnp.float32)
    h = h + aux_ref[0:1, :]            # + bd1   (f32)
    h = jnp.maximum(h, 0.0)            # ReLU    (f32, VPU)

    # decoder_module, second Linear (DH -> 1): degenerate N=1 matmul replaced
    # by a VPU multiply + lane reduction (no MXU push for a 1-column RHS).
    wd2_row = aux_ref[1:2, :]                               # [1, DH] f32
    out = jnp.sum(h * wd2_row, axis=-1) + bd2_ref[0, 0]     # [TB]
    out_ref[...] = out.reshape(1, tb).astype(out_ref.dtype)


def prepare_params(params):
    """One-time, parameter-only preprocessing. Keep OUT of the per-call path."""
    wd1, bd1, wd2, bd2 = params
    F2, DH = wd1.shape
    assert bd1.shape == (DH,) and wd2.shape == (DH, 1) and bd2.shape == (1,)
    wd1_bf = wd1.astype(jnp.bfloat16)                            # MXU operand
    aux = jnp.stack(
        [bd1.astype(jnp.float32), wd2[:, 0].astype(jnp.float32)], axis=0
    )                                                            # [2, DH] f32
    bd2_s = bd2.astype(jnp.float32).reshape(1, 1)                # SMEM scalar
    return wd1_bf, aux, bd2_s


def main_decoder_multivar(f_ref, f, prepared):
    """Fused forward of MainDecoderMultiVar. Returns [B, 1] float32."""
    wd1_bf, aux, bd2_s = prepared
    B, F = f_ref.shape
    assert f.shape == (B, F)
    F2, DH = wd1_bf.shape
    assert F2 == 2 * F

    # Batch tile: whole batch when small; 256/128-row tiles for big batches
    # (fills MXU rows, lane-dense stores). Odd sizes fall back to whole-batch.
    tb = B
    for cand in (256, 128):
        if B > cand and B % cand == 0:
            tb = cand
            break
    nb = B // tb

    out = pl.pallas_call(
        _decoder_kernel,
        out_shape=jax.ShapeDtypeStruct((nb, tb), jnp.float32),
        grid=(nb,),
        in_specs=[
            pl.BlockSpec((tb, F), lambda i: (i, 0)),             # f_ref tile
            pl.BlockSpec((tb, F), lambda i: (i, 0)),             # f tile
            pl.BlockSpec((2 * F, DH), lambda i: (0, 0)),         # wd1 (resident)
            pl.BlockSpec((2, DH), lambda i: (0, 0)),             # aux (resident)
            pl.BlockSpec(memory_space=pltpu.MemorySpace.SMEM),   # bd2 scalar
        ],
        out_specs=pl.BlockSpec((1, tb), lambda i: (i, 0)),       # lane-dense row
        compiler_params=pltpu.CompilerParams(
            dimension_semantics=("parallel",)),
    )(f_ref, f, wd1_bf, aux, bd2_s)

    return out.reshape(B, 1)


def _reference(f_ref, f, params):
    wd1, bd1, wd2, bd2 = params
    cat = jnp.concatenate([f_ref, f], axis=-1)
    h = jnp.maximum(cat @ wd1 + bd1, 0.0)
    return h @ wd2 + bd2


def make_params(key, F, DH, OUT=1):
    ks = jax.random.split(key, 4)

    def lin(kw, fan_in, fan_out):
        s = 1.0 / jnp.sqrt(fan_in)
        return jax.random.uniform(kw, (fan_in, fan_out), jnp.float32, -s, s)

    wd1 = lin(ks[0], 2 * F, DH)
    bd1 = jax.random.uniform(ks[1], (DH,), jnp.float32, -0.1, 0.1)
    wd2 = lin(ks[2], DH, OUT)
    bd2 = jax.random.uniform(ks[3], (OUT,), jnp.float32, -0.1, 0.1)
    return wd1, bd1, wd2, bd2


if __name__ == "__main__":
    key = jax.random.PRNGKey(0)
    kf1, kf2, kp = jax.random.split(key, 3)

    B, F, DH = 2, 32, 32                      # batch=2, feature=32, decoder hidden=32
    f_ref_in = jax.random.normal(kf1, (B, F), jnp.float32)
    f_in = jax.random.normal(kf2, (B, F), jnp.float32)
    params = make_params(kp, F, DH)

    # Parameter prep happens ONCE, outside the per-call path.
    prepared = jax.tree_util.tree_map(jax.block_until_ready, prepare_params(params))

    out = main_decoder_multivar(f_ref_in, f_in, prepared)
    out = jax.block_until_ready(out)

    # Reference on bf16-rounded MXU operands (matches in-kernel bf16 dot inputs
    # with f32 accumulation); biases / wd2 / tail stay f32, as in-kernel.
    wd1, bd1, wd2, bd2 = params
    _bf = lambda a: a.astype(jnp.bfloat16).astype(jnp.float32)
    ref = _reference(_bf(f_ref_in), _bf(f_in), (_bf(wd1), bd1, wd2, bd2))

    assert out.shape == (B, 1)
    assert jnp.allclose(out, ref, atol=2e-3, rtol=2e-3), (out, ref)

    print("KERNEL_OK")
</pallas_src>

<mosaic_0001>
module attributes {stable_mosaic.version = 11 : i64} {
  func.func @_decoder_kernel(%arg0: i32, %arg1: memref<2x32xf32, #tpu.memory_space<vmem>>, %arg2: memref<2x32xf32, #tpu.memory_space<vmem>>, %arg3: memref<64x32xbf16, #tpu.memory_space<vmem>>, %arg4: memref<2x32xf32, #tpu.memory_space<vmem>>, %arg5: memref<1x1xf32, #tpu.memory_space<smem>>, %arg6: memref<1x2xf32, #tpu.memory_space<vmem>>) attributes {dimension_semantics = [#tpu.dimension_semantics<parallel>], iteration_bounds = array<i64: 1>, scalar_prefetch = 0 : i64, scratch_operands = 0 : i64, tpu.core_type = #tpu.core_type<tc>, window_params = [{transform_indices = @transform_0, window_bounds = array<i64: 2, 32>}, {transform_indices = @transform_1, window_bounds = array<i64: 2, 32>}, {pipeline_mode = #tpu.pipeline_mode<synchronous>, transform_indices = @transform_2, window_bounds = array<i64: 64, 32>}, {pipeline_mode = #tpu.pipeline_mode<synchronous>, transform_indices = @transform_3, window_bounds = array<i64: 2, 32>}, {transform_indices = @transform_4, window_bounds = array<i64: 1, 1>}, {transform_indices = @transform_5, window_bounds = array<i64: 1, 2>}]} {
    %c0 = arith.constant 0 : index
    %c0_0 = arith.constant 0 : index
    %0 = vector.load %arg1[%c0, %c0_0] : memref<2x32xf32, #tpu.memory_space<vmem>>, vector<2x32xf32>
    %c0_1 = arith.constant 0 : index
    %c0_2 = arith.constant 0 : index
    %1 = vector.load %arg2[%c0_1, %c0_2] : memref<2x32xf32, #tpu.memory_space<vmem>>, vector<2x32xf32>
    %2 = tpu.concatenate %0, %1 in 1 : vector<2x32xf32>, vector<2x32xf32> -> vector<2x64xf32>
    %3 = arith.truncf %2 : vector<2x64xf32> to vector<2x64xbf16>
    %c0_3 = arith.constant 0 : index
    %c0_4 = arith.constant 0 : index
    %4 = vector.load %arg3[%c0_3, %c0_4] : memref<64x32xbf16, #tpu.memory_space<vmem>>, vector<64x32xbf16>
    %cst = arith.constant dense<0.000000e+00> : vector<2x32xf32>
    %5 = tpu.matmul %3, %4, %cst {dimension_numbers = #tpu.dot_dimension_numbers<[1], [0], [0], [1], [0, 0, 1, 1], [], []>} : vector<2x64xbf16>, vector<64x32xbf16>, vector<2x32xf32> -> vector<2x32xf32>
    %c0_5 = arith.constant 0 : index
    %c0_6 = arith.constant 0 : index
    %6 = vector.load %arg4[%c0_5, %c0_6] : memref<2x32xf32, #tpu.memory_space<vmem>>, vector<1x32xf32>
    %7 = vector.broadcast %6 : vector<1x32xf32> to vector<2x32xf32>
    %8 = arith.addf %5, %7 : vector<2x32xf32>
    %cst_7 = arith.constant 0.000000e+00 : f32
    %9 = vector.broadcast %cst_7 : f32 to vector<2x32xf32>
    %10 = arith.maximumf %8, %9 : vector<2x32xf32>
    %c1 = arith.constant 1 : index
    %c0_8 = arith.constant 0 : index
    %11 = vector.load %arg4[%c1, %c0_8] : memref<2x32xf32, #tpu.memory_space<vmem>>, vector<1x32xf32>
    %12 = vector.broadcast %11 : vector<1x32xf32> to vector<2x32xf32>
    %13 = arith.mulf %10, %12 : vector<2x32xf32>
    %cst_9 = arith.constant dense<0.000000e+00> : vector<2xf32>
    %14 = vector.multi_reduction <add>, %13, %cst_9 [1] : vector<2x32xf32> to vector<2xf32>
    %c0_10 = arith.constant 0 : index
    %c0_11 = arith.constant 0 : index
    %15 = memref.load %arg5[%c0_10, %c0_11] : memref<1x1xf32, #tpu.memory_space<smem>>
    %16 = vector.broadcast %15 : f32 to vector<2xf32>
    %17 = arith.addf %14, %16 : vector<2xf32>
    %18 = vector.shape_cast %17 : vector<2xf32> to vector<1x2xf32>
    %c0_12 = arith.constant 0 : index
    %c0_13 = arith.constant 0 : index
    %19 = vector.load %arg6[%c0_12, %c0_13] : memref<1x2xf32, #tpu.memory_space<vmem>>, vector<1x2xf32>
    tpu.vector_store %arg6[%c0_12, %c0_13], %18 {strides = array<i32>} : memref<1x2xf32, #tpu.memory_space<vmem>>, vector<1x2xf32>,
    return
  }
  func.func @transform_0(%arg0: i32) -> (i32, i32) {
    %c0_i32 = arith.constant 0 : i32
    %c0_i32_0 = arith.constant 0 : i32
    return %arg0, %c0_i32 : i32, i32
  }
  func.func @transform_1(%arg0: i32) -> (i32, i32) {
    %c0_i32 = arith.constant 0 : i32
    %c0_i32_0 = arith.constant 0 : i32
    return %arg0, %c0_i32 : i32, i32
  }
  func.func @transform_2(%arg0: i32) -> (i32, i32) {
    %c0_i32 = arith.constant 0 : i32
    %c0_i32_0 = arith.constant 0 : i32
    %c0_i32_1 = arith.constant 0 : i32
    return %c0_i32, %c0_i32_0 : i32, i32
  }
  func.func @transform_3(%arg0: i32) -> (i32, i32) {
    %c0_i32 = arith.constant 0 : i32
    %c0_i32_0 = arith.constant 0 : i32
    %c0_i32_1 = arith.constant 0 : i32
    return %c0_i32, %c0_i32_0 : i32, i32
  }
  func.func @transform_4(%arg0: i32) -> (i32, i32) {
    %c0_i32 = arith.constant 0 : i32
    %c0_i32_0 = arith.constant 0 : i32
    %c0_i32_1 = arith.constant 0 : i32
    return %c0_i32, %c0_i32_0 : i32, i32
  }
  func.func @transform_5(%arg0: i32) -> (i32, i32) {
    %c0_i32 = arith.constant 0 : i32
    %c0_i32_0 = arith.constant 0 : i32
    return %arg0, %c0_i32 : i32, i32
  }
}

</mosaic_0001>

<llo_original>
// kernel: tpu_custom_call.1
$region0: #{tpu_custom_call.1}
  #allocation0 [shape = 'u32[]', space=smem, size = 0x4, offset = 0x4, fixed_abs, tag = 'smem constant byte address 0x4 - core index']
  #allocation1 [shape = 'u32[144,128]{1,0:T(1,128)}', space=vmem, size = 0x12000, scoped, tag = 'internal scratch']
  #allocation2 [shape = 'f32[1,1]{1,0:T(1,128)S(6)}', space=smem, size = 0x200, scoped, tag = 'scoped memory for tpu_custom_call.1']
  %s0 = inlined_call_operand.vmem [shape: f32[2,32], index: 0, kind: input, shape index: {}]
  %s1 = inlined_call_operand.vmem [shape: f32[2,32], index: 1, kind: input, shape index: {}]
  %s2 = inlined_call_operand.vmem [shape: bf16[64,32], index: 2, kind: input, shape index: {}]
  %s3 = inlined_call_operand.vmem [shape: f32[2,32], index: 3, kind: input, shape index: {}]
  %s4 = inlined_call_operand.<no memory space> [shape: f32[1,1], index: 4, kind: input, shape index: {}]
  %s5 = inlined_call_operand.hbm [shape: f32[1,2], index: 5, kind: output, shape index: {}]
  %s6 = sld [smem:[#allocation0]]
  $region30: #{tpu_custom_call.1} parent=0
    _
  %s8 = ssub.s32 1, %s6
  %s9 = scalar_select 0, %s8, %s6
  %10 = sst [smem:[#allocation2]] %s4
  $region1: #{tpu_custom_call.1} parent=0
    #allocation3 [shape = 'u8[512]{0}', space=vmem, size = 0x400, scoped, tag = 'output window, operand 0, single buffered']
    #allocation4 [shape = 's32[1]{0}', space=sflag, size = 0x4, scoped, tag = 'scoped memory for tpu_custom_call.1']
    %11 = vsyncpa [#allocation4], 0
    // Predicated region
    $region2: #{tpu_custom_call.1} parent=1 // pred_check
      _
    $region3: #{tpu_custom_call.1} parent=1 // pred_check_branch
      %13 = sbr.rel (0) target = $region5
    $region4: #{tpu_custom_call.1} parent=1 // pred_region
      _
    $region5: #{tpu_custom_call.1} parent=1 // pred_fallthru
      _
    // Predicated region
    $region6: #{tpu_custom_call.1} parent=1 // pred_check
      _
    $region7: #{tpu_custom_call.1} parent=1 // pred_check_branch
      %15 = sbr.rel (0) target = $region9
    $region8: #{tpu_custom_call.1} parent=1 // pred_region
      _
    $region9: #{tpu_custom_call.1} parent=1 // pred_fallthru
      _
    // Predicated region
    $region10: #{tpu_custom_call.1} parent=1 // pred_check
      _
    $region11: #{tpu_custom_call.1} parent=1 // pred_check_branch
      %17 = sbr.rel (0) target = $region13
    $region12: #{tpu_custom_call.1} parent=1 // pred_region
      _
    $region13: #{tpu_custom_call.1} parent=1 // pred_fallthru
      _
    // Predicated region
    $region14: #{tpu_custom_call.1} parent=1 // pred_check
      _
    $region15: #{tpu_custom_call.1} parent=1 // pred_check_branch
      %19 = sbr.rel (0) target = $region17
    $region16: #{tpu_custom_call.1} parent=1 // pred_region
      _
    $region17: #{tpu_custom_call.1} parent=1 // pred_fallthru
      _
    // Predicated region
    $region18: #{tpu_custom_call.1} parent=1 // pred_check
      _
    $region19: #{tpu_custom_call.1} parent=1 // pred_check_branch
      %21 = sbr.rel (0) target = $region21
    $region20: #{tpu_custom_call.1} parent=1 // pred_region
      _
    $region21: #{tpu_custom_call.1} parent=1 // pred_fallthru
      _
    %v23 = vld [vmem:[%s0] sm:$0x3]
    %v24 = vld [vmem:[%s1] sm:$0x3]
    %26 = vrot.lane.b32.xlu0 %v24, 32
    %v27 = vpop.permute.xlu0 %26
    %vm29 = vcmask 261120
    %v30 = vsel %vm29, %v23, %v27
    %v31 = vpack.c.bf16 %v30, %v30
    %v32 = vld [vmem:[%s2] sm:$0xf]
    %v33 = vld [vmem:[%s2 + $0x4] sm:$0xf]
    %v34 = vld [vmem:[%s2 + $0x8] sm:$0xf]
    %v35 = vld [vmem:[%s2 + $0xc] sm:$0xf]
    %v36 = vld [vmem:[%s2 + $0x10] sm:$0xf]
    %v37 = vld [vmem:[%s2 + $0x14] sm:$0xf]
    %v38 = vld [vmem:[%s2 + $0x18] sm:$0xf]
    %v39 = vld [vmem:[%s2 + $0x1c] sm:$0xf]
    %v40 = vld [vmem:[%s3] sm:$0x1]
    %v41 = vlaneseq
    %v42 = vshrl.u32 %v41, 7
    %v43 = vsub.s32 0, %v42
    %v44 = vrot.slane %v40, %v43
    %v53 = vunpack.c.l.b16 %v32
    %v54 = vunpack.c.l.b16 %v33
    %v55 = vunpack.c.l.b16 %v34
    %v56 = vunpack.c.l.b16 %v35
    %v57 = vunpack.c.l.b16 %v36
    %v58 = vunpack.c.l.b16 %v37
    %v59 = vunpack.c.l.b16 %v38
    %v60 = vunpack.c.l.b16 %v39
    %v61 = vpack.c.b16 %v54, %v53
    %v62 = vpack.c.b16 %v56, %v55
    %v63 = vpack.c.b16 %v58, %v57
    %v64 = vpack.c.b16 %v60, %v59
    %vm69 = vcmask 523264
    %v71 = vsel %vm69, %v31, 0
    %73 = vmatprep.subr.bf16.mxu0 0
    %74 = vmatpush1.bf16.msra.mxu0 %v61
    %75 = vmatprep.subr.bf16.mxu0 0
    %76 = vmatpush1.bf16.msra.mxu0 %v62
    %77 = vmatprep.subr.bf16.mxu0 0
    %78 = vmatpush1.bf16.msra.mxu0 %v63
    %79 = vmatprep.subr.bf16.mxu0 0
    %80 = vmatpush1.bf16.msra.mxu0 %v64
    %81 = vmatprep.subr.bf16.mxu0 0
    %82 = vmatpush1.bf16.msra.mxu0 0
    %83 = vmatprep.subr.bf16.mxu0 0
    %84 = vmatpush1.bf16.msra.mxu0 0
    %85 = vmatprep.subr.bf16.mxu0 0
    %86 = vmatpush1.bf16.msra.mxu0 0
    %87 = vmatprep.subr.bf16.mxu0 0
    %88 = vmatpush1.bf16.msra.mxu0 0
    %89 = vmatprep.subr.bf16.mxu0 0
    %90 = vmatpush1.bf16.msra.mxu0 0
    %91 = vmatprep.subr.bf16.mxu0 0
    %92 = vmatpush1.bf16.msra.mxu0 0
    %93 = vmatprep.subr.bf16.mxu0 0
    %94 = vmatpush1.bf16.msra.mxu0 0
    %95 = vmatprep.subr.bf16.mxu0 0
    %96 = vmatpush1.bf16.msra.mxu0 0
    %97 = vmatprep.subr.bf16.mxu0 0
    %98 = vmatpush1.bf16.msra.mxu0 0
    %99 = vmatprep.subr.bf16.mxu0 0
    %100 = vmatpush1.bf16.msra.mxu0 0
    %101 = vmatprep.subr.bf16.mxu0 0
    %102 = vmatpush1.bf16.msra.mxu0 0
    %103 = vmatprep.subr.bf16.mxu0 0
    %104 = vmatpush1.bf16.msra.mxu0 0
    %105 = vmatprep.mubr.bf16.mxu0 0
    %106 = vmatmul.mubr.bf16.gmra.mrb[0].mxu0 %v71
    %v107 = vpop.f32.mrb[0].mxu0
    %v108 = vadd.f32 %v44, %v107
    %v109 = vpop.f32.mrb[0].mxu0
    %v110 = vpop.f32.mrb[0].mxu0
    %v111 = vpop.f32.mrb[0].mxu0
    %112 = vdwg.mxu0
    %v113 = vmax.f32 %v108, 0.0
    %v114 = vld [vmem:[%s3 + $0x1] sm:$0x1]
    %v115 = vlaneseq
    %v116 = vshrl.u32 %v115, 7
    %v117 = vsub.s32 0, %v116
    %v118 = vrot.slane %v114, %v117
    %v119 = vmul.f32 %v113, %v118
    %vm120 = vcmask 254976
    %v121 = vsel %vm120, %v119, 0.0
    %122 = vadd.xlane.f32.xlu0 %v121
    %v123 = vpop.xlane.xlu0 %122
    %s124 = sld [smem:[#allocation2]]
    %v125 = vstv %s124
    %v126 = vadd.f32 %v123, %v125
    %v128 = vlaneseq
    %v129 = vand.u32 %v128, 127
    %v130 = vlaneseq
    %v131 = vshrl.u32 %v130, 7
    %v132 = vsub.s32 %v129, %v131
    %v133 = vrot.slane %v126, %v132
    %vm135 = vcmask 8192
    %136 = vst.msk [vmem:[#allocation3] sm:$0x1] %vm135, %v133
    // Predicated region
    $region22: #{tpu_custom_call.1} parent=1 // pred_check
      _
    $region23: #{tpu_custom_call.1} parent=1 // pred_check_branch
      %138 = sbr.rel (0) target = $region25
    $region24: #{tpu_custom_call.1} parent=1 // pred_region
      %s140 = ssub.s32 16, 16
      %141 = vsyncadd [#allocation4], %s140
      %s143 = sshll.u32 [#allocation3], 4
      %s144 = int_to_ptr.vmem [resolvable:$true] %s143
      %146 = dma.vmem_to_hbm [thread:$0]  %s144, 16, %s5, [#allocation4]
    $region25: #{tpu_custom_call.1} parent=1 // pred_fallthru
      _
    // Predicated region
    $region26: #{tpu_custom_call.1} parent=1 // pred_check
      _
    $region27: #{tpu_custom_call.1} parent=1 // pred_check_branch
      %148 = sbr.rel (0) target = $region29
    $region28: #{tpu_custom_call.1} parent=1 // pred_region
      %149 = dma.done [#allocation4], 16
    $region29: #{tpu_custom_call.1} parent=1 // pred_fallthru
      _
    %150 = vsyncpa [#allocation4], 1

</llo_original>
